<compile_context>
chip_gen: v7x
topology: tpu7x:2x2x1
jax: 0.10.0
libtpu: 0.0.40
codegen_flags: <defaults>
</compile_context>

<pallas_src>
import jax
import jax.numpy as jnp
from jax.experimental import pallas as pl
from jax.experimental.pallas import tpu as pltpu


def _make_fused_mlp_kernel(n_layers):
    """Build the fused kernel body for an MLP with `n_layers` linear layers.

    Positional ref layout:
      inputs : x, (w0_hbm, s0), (w1_hbm, s1), ..., (w_{L-1}_hbm, s_{L-1})
      outputs: out
      scratch: wbuf_0 ... wbuf_{L-1}, dma_sem[L]
    """

    def kernel(*refs):
        x_ref = refs[0]
        w_hbm = [refs[1 + 2 * i] for i in range(n_layers)]
        s_ref = [refs[2 + 2 * i] for i in range(n_layers)]
        o_ref = refs[1 + 2 * n_layers]
        w_buf = list(refs[2 + 2 * n_layers: 2 + 3 * n_layers])
        sem = refs[2 + 3 * n_layers]

        # Kick off every weight DMA up front; waits happen per layer right before
        # use, so layer-i compute overlaps with the copies of layers i+1..L-1.
        copies = [
            pltpu.make_async_copy(w_hbm[i], w_buf[i], sem.at[i])
            for i in range(n_layers)
        ]
        for c in copies:
            c.start()

        h = x_ref[...]                                    # f32 activations
        for i in range(n_layers):
            copies[i].wait()
            s = s_ref[i][...]                             # (1, N) folded shift, f32
            if i < n_layers - 1:
                # bf16 x bf16 -> single-pass MXU matmul with f32 accumulate.
                h = jnp.dot(h.astype(jnp.bfloat16), w_buf[i][...],
                            preferred_element_type=jnp.float32) + s
                h = jnp.maximum(h, 0.0)                   # ReLU; Dropout(eval) = identity
            else:
                # Head (prev -> 1): VPU multiply + row reduction; avoids an N=1
                # MXU push/pop round-trip for a single output column.
                w_row = w_buf[i][...]                     # (1, prev) f32 row
                h = jnp.sum(h * w_row, axis=-1, keepdims=True) + s
        o_ref[...] = h.astype(o_ref.dtype)

    return kernel


def _mlp_forward_impl(folded_params, x):
    n_layers = len(folded_params)
    flat = []
    in_specs = [pl.BlockSpec(memory_space=pltpu.MemorySpace.VMEM)]   # x
    scratch = []
    for w, s in folded_params:
        flat.append(w)
        flat.append(s)
        in_specs.append(pl.BlockSpec(memory_space=pl.ANY))           # weight stays in HBM
        in_specs.append(pl.BlockSpec(memory_space=pltpu.MemorySpace.VMEM))  # tiny shift
        scratch.append(pltpu.VMEM(w.shape, w.dtype))                 # per-layer VMEM buffer
    scratch.append(pltpu.SemaphoreType.DMA((n_layers,)))

    return pl.pallas_call(
        _make_fused_mlp_kernel(n_layers),
        out_shape=jax.ShapeDtypeStruct((x.shape[0], 1), jnp.float32),
        in_specs=in_specs,
        out_specs=pl.BlockSpec(memory_space=pltpu.MemorySpace.VMEM),
        scratch_shapes=scratch,
    )(x, *flat)


# One dispatch for the whole network.
mlp_forward = jax.jit(_mlp_forward_impl)


def init_mlp_params(key, input_size, hidden_sizes):
    """Match the PyTorch module init: Linear xavier_uniform weight / zero bias;
    BatchNorm1d gamma=1, beta=0, running_mean=0, running_var=1 (eval mode)."""
    params = []
    sizes = [input_size] + list(hidden_sizes) + [1]
    for li in range(len(sizes) - 1):
        fan_in, fan_out = sizes[li], sizes[li + 1]
        key, sub = jax.random.split(key)
        limit = (6.0 / (fan_in + fan_out)) ** 0.5
        # PyTorch Linear weight is [out, in]; store transposed [in, out] so kernel does x @ W.
        w = jax.random.uniform(sub, (fan_in, fan_out), jnp.float32, -limit, limit)
        b = jnp.zeros((fan_out,), jnp.float32)
        is_hidden = li < len(hidden_sizes)
        layer = dict(w=w, b=b, relu=is_hidden)
        if is_hidden:
            layer.update(
                gamma=jnp.ones((fan_out,), jnp.float32),
                beta=jnp.zeros((fan_out,), jnp.float32),
                mean=jnp.zeros((fan_out,), jnp.float32),
                var=jnp.ones((fan_out,), jnp.float32),
            )
        params.append(layer)
    return params


def fold_params(raw_params, eps=1e-5):
    """Fold eval-mode BatchNorm into the linear layer:
         ((x@W + b) - mean)/sqrt(var+eps)*gamma + beta
           == x @ (W*scale) + (b*scale + beta - mean*scale)
    Hidden-layer weights -> bf16 (halves DMA bytes, single-pass MXU); head weight is
    stored as a lane-major (1, prev) f32 row for the in-kernel VPU reduction.
    Returns [(W', shift'[1, N]), ...]."""
    folded = []
    for layer in raw_params:
        w, b = layer["w"], layer["b"]
        if layer["relu"]:
            scale = layer["gamma"] / jnp.sqrt(layer["var"] + eps)
            w_f = (w * scale[None, :]).astype(jnp.bfloat16)
            s_f = b * scale + layer["beta"] - layer["mean"] * scale
        else:
            w_f = w.reshape(1, -1).astype(jnp.float32)   # (prev, 1) -> (1, prev) row
            s_f = b
        folded.append((w_f, s_f.reshape(1, -1).astype(jnp.float32)))
    return folded


def mlp_reference(raw_params, x, eps=1e-5):
    """Pure-JAX f32 reference using the UNFOLDED (PyTorch-shaped) eval-mode math."""
    h = x
    for layer in raw_params:
        y = h @ layer["w"] + layer["b"]
        if layer["relu"]:
            y = (y - layer["mean"]) / jnp.sqrt(layer["var"] + eps) * layer["gamma"] + layer["beta"]
            y = jnp.maximum(y, 0.0)
            # Dropout is identity in eval mode.
        h = y
    return h


if __name__ == "__main__":
    key = jax.random.PRNGKey(0)
    batch = 8
    input_size = 32
    hidden_sizes = [512, 256, 128, 64]

    key, xkey = jax.random.split(key)
    x = jax.random.normal(xkey, (batch, input_size), jnp.float32)

    raw_params = init_mlp_params(key, input_size, hidden_sizes)
    # TODO(synk): training-mode BatchNorm batch statistics and Dropout masking are not
    # implemented (eval-mode forward only).
    folded = fold_params(raw_params)

    out = jax.block_until_ready(mlp_forward(folded, x))
    ref = mlp_reference(raw_params, x)

    assert out.shape == (batch, 1)
    # bf16 weights/activations feed the MXU, so compare against the f32 reference with a
    # correspondingly loosened tolerance.
    err = float(jnp.max(jnp.abs(out - ref)))
    assert jnp.allclose(out, ref, atol=3e-2, rtol=3e-2), f"max abs err {err}"

    print("KERNEL_OK")
</pallas_src>

<mosaic_0001>
module attributes {stable_mosaic.version = 11 : i64} {
  func.func @kernel(%arg0: memref<8x32xf32, #tpu.memory_space<vmem>>, %arg1: memref<32x512xbf16, #tpu.memory_space<any>>, %arg2: memref<1x512xf32, #tpu.memory_space<vmem>>, %arg3: memref<512x256xbf16, #tpu.memory_space<any>>, %arg4: memref<1x256xf32, #tpu.memory_space<vmem>>, %arg5: memref<256x128xbf16, #tpu.memory_space<any>>, %arg6: memref<1x128xf32, #tpu.memory_space<vmem>>, %arg7: memref<128x64xbf16, #tpu.memory_space<any>>, %arg8: memref<1x64xf32, #tpu.memory_space<vmem>>, %arg9: memref<1x64xf32, #tpu.memory_space<any>>, %arg10: memref<1x1xf32, #tpu.memory_space<vmem>>, %arg11: memref<8x1xf32, #tpu.memory_space<vmem>>, %arg12: memref<32x512xbf16, #tpu.memory_space<vmem>>, %arg13: memref<512x256xbf16, #tpu.memory_space<vmem>>, %arg14: memref<256x128xbf16, #tpu.memory_space<vmem>>, %arg15: memref<128x64xbf16, #tpu.memory_space<vmem>>, %arg16: memref<1x64xf32, #tpu.memory_space<vmem>>, %arg17: memref<5x!tpu.dma_semaphore, #tpu.memory_space<semaphore_mem>>) attributes {dimension_semantics = [], scalar_prefetch = 0 : i64, scratch_operands = 6 : i64, tpu.core_type = #tpu.core_type<tc>} {
    %c0_i32 = arith.constant 0 : i32
    %0 = tpu.memref_slice %arg17[%c0_i32] : memref<5x!tpu.dma_semaphore, #tpu.memory_space<semaphore_mem>> -> memref<1x!tpu.dma_semaphore, #tpu.memory_space<semaphore_mem>>
    %1 = tpu.memref_squeeze %0 : memref<1x!tpu.dma_semaphore, #tpu.memory_space<semaphore_mem>> -> memref<!tpu.dma_semaphore, #tpu.memory_space<semaphore_mem>>
    tpu.enqueue_dma source(%arg1 : memref<32x512xbf16, #tpu.memory_space<any>>) target(%arg12 : memref<32x512xbf16, #tpu.memory_space<vmem>>) target_semaphore(%1 : memref<!tpu.dma_semaphore, #tpu.memory_space<semaphore_mem>>)
    %c1_i32 = arith.constant 1 : i32
    %2 = tpu.memref_slice %arg17[%c1_i32] : memref<5x!tpu.dma_semaphore, #tpu.memory_space<semaphore_mem>> -> memref<1x!tpu.dma_semaphore, #tpu.memory_space<semaphore_mem>>
    %3 = tpu.memref_squeeze %2 : memref<1x!tpu.dma_semaphore, #tpu.memory_space<semaphore_mem>> -> memref<!tpu.dma_semaphore, #tpu.memory_space<semaphore_mem>>
    tpu.enqueue_dma source(%arg3 : memref<512x256xbf16, #tpu.memory_space<any>>) target(%arg13 : memref<512x256xbf16, #tpu.memory_space<vmem>>) target_semaphore(%3 : memref<!tpu.dma_semaphore, #tpu.memory_space<semaphore_mem>>)
    %c2_i32 = arith.constant 2 : i32
    %4 = tpu.memref_slice %arg17[%c2_i32] : memref<5x!tpu.dma_semaphore, #tpu.memory_space<semaphore_mem>> -> memref<1x!tpu.dma_semaphore, #tpu.memory_space<semaphore_mem>>
    %5 = tpu.memref_squeeze %4 : memref<1x!tpu.dma_semaphore, #tpu.memory_space<semaphore_mem>> -> memref<!tpu.dma_semaphore, #tpu.memory_space<semaphore_mem>>
    tpu.enqueue_dma source(%arg5 : memref<256x128xbf16, #tpu.memory_space<any>>) target(%arg14 : memref<256x128xbf16, #tpu.memory_space<vmem>>) target_semaphore(%5 : memref<!tpu.dma_semaphore, #tpu.memory_space<semaphore_mem>>)
    %c3_i32 = arith.constant 3 : i32
    %6 = tpu.memref_slice %arg17[%c3_i32] : memref<5x!tpu.dma_semaphore, #tpu.memory_space<semaphore_mem>> -> memref<1x!tpu.dma_semaphore, #tpu.memory_space<semaphore_mem>>
    %7 = tpu.memref_squeeze %6 : memref<1x!tpu.dma_semaphore, #tpu.memory_space<semaphore_mem>> -> memref<!tpu.dma_semaphore, #tpu.memory_space<semaphore_mem>>
    tpu.enqueue_dma source(%arg7 : memref<128x64xbf16, #tpu.memory_space<any>>) target(%arg15 : memref<128x64xbf16, #tpu.memory_space<vmem>>) target_semaphore(%7 : memref<!tpu.dma_semaphore, #tpu.memory_space<semaphore_mem>>)
    %c4_i32 = arith.constant 4 : i32
    %8 = tpu.memref_slice %arg17[%c4_i32] : memref<5x!tpu.dma_semaphore, #tpu.memory_space<semaphore_mem>> -> memref<1x!tpu.dma_semaphore, #tpu.memory_space<semaphore_mem>>
    %9 = tpu.memref_squeeze %8 : memref<1x!tpu.dma_semaphore, #tpu.memory_space<semaphore_mem>> -> memref<!tpu.dma_semaphore, #tpu.memory_space<semaphore_mem>>
    tpu.enqueue_dma source(%arg9 : memref<1x64xf32, #tpu.memory_space<any>>) target(%arg16 : memref<1x64xf32, #tpu.memory_space<vmem>>) target_semaphore(%9 : memref<!tpu.dma_semaphore, #tpu.memory_space<semaphore_mem>>)
    %c0 = arith.constant 0 : index
    %c0_0 = arith.constant 0 : index
    %10 = vector.load %arg0[%c0, %c0_0] : memref<8x32xf32, #tpu.memory_space<vmem>>, vector<8x32xf32>
    %c0_i32_1 = arith.constant 0 : i32
    %11 = tpu.memref_slice %arg17[%c0_i32_1] : memref<5x!tpu.dma_semaphore, #tpu.memory_space<semaphore_mem>> -> memref<1x!tpu.dma_semaphore, #tpu.memory_space<semaphore_mem>>
    %12 = tpu.memref_squeeze %11 : memref<1x!tpu.dma_semaphore, #tpu.memory_space<semaphore_mem>> -> memref<!tpu.dma_semaphore, #tpu.memory_space<semaphore_mem>>
    tpu.wait_dma2 semaphore(%12 : memref<!tpu.dma_semaphore, #tpu.memory_space<semaphore_mem>>) src(%arg1 : memref<32x512xbf16, #tpu.memory_space<any>>) dst(%arg12 : memref<32x512xbf16, #tpu.memory_space<vmem>>)
    %c0_2 = arith.constant 0 : index
    %c0_3 = arith.constant 0 : index
    %13 = vector.load %arg2[%c0_2, %c0_3] : memref<1x512xf32, #tpu.memory_space<vmem>>, vector<1x512xf32>
    %14 = arith.truncf %10 : vector<8x32xf32> to vector<8x32xbf16>
    %c0_4 = arith.constant 0 : index
    %c0_5 = arith.constant 0 : index
    %15 = vector.load %arg12[%c0_4, %c0_5] : memref<32x512xbf16, #tpu.memory_space<vmem>>, vector<32x512xbf16>
    %cst = arith.constant dense<0.000000e+00> : vector<8x512xf32>
    %16 = tpu.matmul %14, %15, %cst {dimension_numbers = #tpu.dot_dimension_numbers<[1], [0], [0], [1], [0, 0, 1, 1], [], []>} : vector<8x32xbf16>, vector<32x512xbf16>, vector<8x512xf32> -> vector<8x512xf32>
    %17 = vector.broadcast %13 : vector<1x512xf32> to vector<8x512xf32>
    %18 = arith.addf %16, %17 : vector<8x512xf32>
    %cst_6 = arith.constant 0.000000e+00 : f32
    %19 = vector.broadcast %cst_6 : f32 to vector<8x512xf32>
    %20 = arith.maximumf %18, %19 : vector<8x512xf32>
    %c1_i32_7 = arith.constant 1 : i32
    %21 = tpu.memref_slice %arg17[%c1_i32_7] : memref<5x!tpu.dma_semaphore, #tpu.memory_space<semaphore_mem>> -> memref<1x!tpu.dma_semaphore, #tpu.memory_space<semaphore_mem>>
    %22 = tpu.memref_squeeze %21 : memref<1x!tpu.dma_semaphore, #tpu.memory_space<semaphore_mem>> -> memref<!tpu.dma_semaphore, #tpu.memory_space<semaphore_mem>>
    tpu.wait_dma2 semaphore(%22 : memref<!tpu.dma_semaphore, #tpu.memory_space<semaphore_mem>>) src(%arg3 : memref<512x256xbf16, #tpu.memory_space<any>>) dst(%arg13 : memref<512x256xbf16, #tpu.memory_space<vmem>>)
    %c0_8 = arith.constant 0 : index
    %c0_9 = arith.constant 0 : index
    %23 = vector.load %arg4[%c0_8, %c0_9] : memref<1x256xf32, #tpu.memory_space<vmem>>, vector<1x256xf32>
    %24 = arith.truncf %20 : vector<8x512xf32> to vector<8x512xbf16>
    %c0_10 = arith.constant 0 : index
    %c0_11 = arith.constant 0 : index
    %25 = vector.load %arg13[%c0_10, %c0_11] : memref<512x256xbf16, #tpu.memory_space<vmem>>, vector<512x256xbf16>
    %cst_12 = arith.constant dense<0.000000e+00> : vector<8x256xf32>
    %26 = tpu.matmul %24, %25, %cst_12 {dimension_numbers = #tpu.dot_dimension_numbers<[1], [0], [0], [1], [0, 0, 1, 1], [], []>} : vector<8x512xbf16>, vector<512x256xbf16>, vector<8x256xf32> -> vector<8x256xf32>
    %27 = vector.broadcast %23 : vector<1x256xf32> to vector<8x256xf32>
    %28 = arith.addf %26, %27 : vector<8x256xf32>
    %cst_13 = arith.constant 0.000000e+00 : f32
    %29 = vector.broadcast %cst_13 : f32 to vector<8x256xf32>
    %30 = arith.maximumf %28, %29 : vector<8x256xf32>
    %c2_i32_14 = arith.constant 2 : i32
    %31 = tpu.memref_slice %arg17[%c2_i32_14] : memref<5x!tpu.dma_semaphore, #tpu.memory_space<semaphore_mem>> -> memref<1x!tpu.dma_semaphore, #tpu.memory_space<semaphore_mem>>
    %32 = tpu.memref_squeeze %31 : memref<1x!tpu.dma_semaphore, #tpu.memory_space<semaphore_mem>> -> memref<!tpu.dma_semaphore, #tpu.memory_space<semaphore_mem>>
    tpu.wait_dma2 semaphore(%32 : memref<!tpu.dma_semaphore, #tpu.memory_space<semaphore_mem>>) src(%arg5 : memref<256x128xbf16, #tpu.memory_space<any>>) dst(%arg14 : memref<256x128xbf16, #tpu.memory_space<vmem>>)
    %c0_15 = arith.constant 0 : index
    %c0_16 = arith.constant 0 : index
    %33 = vector.load %arg6[%c0_15, %c0_16] : memref<1x128xf32, #tpu.memory_space<vmem>>, vector<1x128xf32>
    %34 = arith.truncf %30 : vector<8x256xf32> to vector<8x256xbf16>
    %c0_17 = arith.constant 0 : index
    %c0_18 = arith.constant 0 : index
    %35 = vector.load %arg14[%c0_17, %c0_18] : memref<256x128xbf16, #tpu.memory_space<vmem>>, vector<256x128xbf16>
    %cst_19 = arith.constant dense<0.000000e+00> : vector<8x128xf32>
    %36 = tpu.matmul %34, %35, %cst_19 {dimension_numbers = #tpu.dot_dimension_numbers<[1], [0], [0], [1], [0, 0, 1, 1], [], []>} : vector<8x256xbf16>, vector<256x128xbf16>, vector<8x128xf32> -> vector<8x128xf32>
    %37 = vector.broadcast %33 : vector<1x128xf32> to vector<8x128xf32>
    %38 = arith.addf %36, %37 : vector<8x128xf32>
    %cst_20 = arith.constant 0.000000e+00 : f32
    %39 = vector.broadcast %cst_20 : f32 to vector<8x128xf32>
    %40 = arith.maximumf %38, %39 : vector<8x128xf32>
    %c3_i32_21 = arith.constant 3 : i32
    %41 = tpu.memref_slice %arg17[%c3_i32_21] : memref<5x!tpu.dma_semaphore, #tpu.memory_space<semaphore_mem>> -> memref<1x!tpu.dma_semaphore, #tpu.memory_space<semaphore_mem>>
    %42 = tpu.memref_squeeze %41 : memref<1x!tpu.dma_semaphore, #tpu.memory_space<semaphore_mem>> -> memref<!tpu.dma_semaphore, #tpu.memory_space<semaphore_mem>>
    tpu.wait_dma2 semaphore(%42 : memref<!tpu.dma_semaphore, #tpu.memory_space<semaphore_mem>>) src(%arg7 : memref<128x64xbf16, #tpu.memory_space<any>>) dst(%arg15 : memref<128x64xbf16, #tpu.memory_space<vmem>>)
    %c0_22 = arith.constant 0 : index
    %c0_23 = arith.constant 0 : index
    %43 = vector.load %arg8[%c0_22, %c0_23] : memref<1x64xf32, #tpu.memory_space<vmem>>, vector<1x64xf32>
    %44 = arith.truncf %40 : vector<8x128xf32> to vector<8x128xbf16>
    %c0_24 = arith.constant 0 : index
    %c0_25 = arith.constant 0 : index
    %45 = vector.load %arg15[%c0_24, %c0_25] : memref<128x64xbf16, #tpu.memory_space<vmem>>, vector<128x64xbf16>
    %cst_26 = arith.constant dense<0.000000e+00> : vector<8x64xf32>
    %46 = tpu.matmul %44, %45, %cst_26 {dimension_numbers = #tpu.dot_dimension_numbers<[1], [0], [0], [1], [0, 0, 1, 1], [], []>} : vector<8x128xbf16>, vector<128x64xbf16>, vector<8x64xf32> -> vector<8x64xf32>
    %47 = vector.broadcast %43 : vector<1x64xf32> to vector<8x64xf32>
    %48 = arith.addf %46, %47 : vector<8x64xf32>
    %cst_27 = arith.constant 0.000000e+00 : f32
    %49 = vector.broadcast %cst_27 : f32 to vector<8x64xf32>
    %50 = arith.maximumf %48, %49 : vector<8x64xf32>
    %c4_i32_28 = arith.constant 4 : i32
    %51 = tpu.memref_slice %arg17[%c4_i32_28] : memref<5x!tpu.dma_semaphore, #tpu.memory_space<semaphore_mem>> -> memref<1x!tpu.dma_semaphore, #tpu.memory_space<semaphore_mem>>
    %52 = tpu.memref_squeeze %51 : memref<1x!tpu.dma_semaphore, #tpu.memory_space<semaphore_mem>> -> memref<!tpu.dma_semaphore, #tpu.memory_space<semaphore_mem>>
    tpu.wait_dma2 semaphore(%52 : memref<!tpu.dma_semaphore, #tpu.memory_space<semaphore_mem>>) src(%arg9 : memref<1x64xf32, #tpu.memory_space<any>>) dst(%arg16 : memref<1x64xf32, #tpu.memory_space<vmem>>)
    %c0_29 = arith.constant 0 : index
    %c0_30 = arith.constant 0 : index
    %53 = vector.load %arg10[%c0_29, %c0_30] : memref<1x1xf32, #tpu.memory_space<vmem>>, vector<1x1xf32>
    %c0_31 = arith.constant 0 : index
    %c0_32 = arith.constant 0 : index
    %54 = vector.load %arg16[%c0_31, %c0_32] : memref<1x64xf32, #tpu.memory_space<vmem>>, vector<1x64xf32>
    %55 = vector.broadcast %54 : vector<1x64xf32> to vector<8x64xf32>
    %56 = arith.mulf %50, %55 : vector<8x64xf32>
    %cst_33 = arith.constant dense<0.000000e+00> : vector<8xf32>
    %57 = vector.multi_reduction <add>, %56, %cst_33 [1] : vector<8x64xf32> to vector<8xf32>
    %58 = vector.shape_cast %57 : vector<8xf32> to vector<8x1xf32>
    %59 = vector.broadcast %53 : vector<1x1xf32> to vector<8x1xf32>
    %60 = arith.addf %58, %59 : vector<8x1xf32>
    %c0_34 = arith.constant 0 : index
    %c0_35 = arith.constant 0 : index
    %61 = vector.load %arg11[%c0_34, %c0_35] : memref<8x1xf32, #tpu.memory_space<vmem>>, vector<8x1xf32>
    tpu.vector_store %arg11[%c0_34, %c0_35], %60 {strides = array<i32>} : memref<8x1xf32, #tpu.memory_space<vmem>>, vector<8x1xf32>,
    return
  }
}

</mosaic_0001>

<llo_original>
// kernel: _mlp_forward_impl.1
$region0: #{_mlp_forward_impl.1}
  #allocation0 [shape = 'u32[]', space=smem, size = 0x4, offset = 0x4, fixed_abs, tag = 'smem constant byte address 0x4 - core index']
  #allocation1 [shape = 'u32[144,128]{1,0:T(1,128)}', space=vmem, size = 0x12000, scoped, tag = 'internal scratch']
  #allocation2 [shape = 'bf16[32,512]{1,0:T(16,128)(2,1)}', space=vmem, size = 0x8000, scoped, tag = 'scratch operand']
  #allocation3 [shape = 'bf16[512,256]{1,0:T(16,128)(2,1)}', space=vmem, size = 0x40000, scoped, tag = 'scratch operand']
  #allocation4 [shape = 'bf16[256,128]{1,0:T(16,128)(2,1)}', space=vmem, size = 0x10000, scoped, tag = 'scratch operand']
  #allocation5 [shape = 'bf16[128,64]{1,0:T(16,128)(2,1)}', space=vmem, size = 0x8000, scoped, tag = 'scratch operand']
  #allocation6 [shape = 'f32[1,64]{1,0:T(1,128)}', space=vmem, size = 0x200, scoped, tag = 'scratch operand']
  #allocation7 [shape = 's32[5]{0}', space=sflag, size = 0x14, scoped, tag = 'scratch operand']
  #allocation8 [shape = 'f32[1,1]{1,0:T(1,128)S(1)}', space=vmem, size = 0x200, scoped, tag = 'scoped memory for _mlp_forward_impl.1']
  #allocation9 [shape = 's32[]', space=sflag, size = 0x4, offset = 0, fixed_abs, tag = 'sflag constant byte address 0x0 - dummy sync flag']
  #allocation10 [shape = 's32[]', space=sflag, size = 0x4, offset = 0, fixed_abs, tag = 'sflag constant byte address 0x0 - dummy sync flag']
  #allocation12 [shape = 's32[]', space=sflag, size = 0x4, offset = 0, fixed_abs, tag = 'sflag constant byte address 0x0 - dummy sync flag']
  #allocation13 [shape = 's32[]', space=sflag, size = 0x4, offset = 0, fixed_abs, tag = 'sflag constant byte address 0x0 - dummy sync flag']
  #allocation14 [shape = 'u32[]', space=smem, size = 0x4, offset = 0x44, fixed_abs, tag = 'smem constant byte address 0x44 - assertion arg 0']
  #allocation15 [shape = 'u32[]', space=smem, size = 0x4, offset = 0x48, fixed_abs, tag = 'smem constant byte address 0x48 - assertion arg 1']
  #allocation16 [shape = 's32[]', space=sflag, size = 0x4, offset = 0, fixed_abs, tag = 'sflag constant byte address 0x0 - dummy sync flag']
  #allocation17 [shape = 's32[]', space=sflag, size = 0x4, offset = 0, fixed_abs, tag = 'sflag constant byte address 0x0 - dummy sync flag']
  %s0 = inlined_call_operand.vmem [shape: f32[8,32], index: 0, kind: input, shape index: {}]
  %s1 = inlined_call_operand.vmem [shape: bf16[32,512], index: 1, kind: input, shape index: {}]
  %s2 = inlined_call_operand.vmem [shape: f32[1,512], index: 2, kind: input, shape index: {}]
  %s3 = inlined_call_operand.hbm [shape: bf16[512,256], index: 3, kind: input, shape index: {}]
  %s4 = inlined_call_operand.vmem [shape: f32[1,256], index: 4, kind: input, shape index: {}]
  %s5 = inlined_call_operand.hbm [shape: bf16[256,128], index: 5, kind: input, shape index: {}]
  %s6 = inlined_call_operand.vmem [shape: f32[1,128], index: 6, kind: input, shape index: {}]
  %s7 = inlined_call_operand.vmem [shape: bf16[128,64], index: 7, kind: input, shape index: {}]
  %s8 = inlined_call_operand.vmem [shape: f32[1,64], index: 8, kind: input, shape index: {}]
  %s9 = inlined_call_operand.vmem [shape: f32[1,64], index: 9, kind: input, shape index: {}]
  %s10 = inlined_call_operand.<no memory space> [shape: f32[1,1], index: 10, kind: input, shape index: {}]
  %s11 = inlined_call_operand.vmem [shape: f32[8,1], index: 11, kind: output, shape index: {}]
  %s12 = sld [smem:[#allocation0]]
  $region139: #{_mlp_forward_impl.1} parent=0
    _
  %s14 = ssub.s32 1, %s12
  %s15 = scalar_select 0, %s14, %s12
  %v16 = vstv %s10
  %17 = vst [vmem:[#allocation8] sm:$0x1] %v16
  $region1: #{_mlp_forward_impl.1} parent=0
    #allocation11 [shape = 'u32[9]{0}', space=smem, size = 0x24, scoped, tag = 'DMA stride descriptor']
    // Predicated region
    $region2: #{_mlp_forward_impl.1} parent=1 // pred_check
      _
    $region3: #{_mlp_forward_impl.1} parent=1 // pred_check_branch
      %19 = sbr.rel (0) target = $region5
    $region4: #{_mlp_forward_impl.1} parent=1 // pred_region
      _
    $region5: #{_mlp_forward_impl.1} parent=1 // pred_fallthru
      _
    // Predicated region
    $region6: #{_mlp_forward_impl.1} parent=1 // pred_check
      _
    $region7: #{_mlp_forward_impl.1} parent=1 // pred_check_branch
      %21 = sbr.rel (0) target = $region9
    $region8: #{_mlp_forward_impl.1} parent=1 // pred_region
      _
    $region9: #{_mlp_forward_impl.1} parent=1 // pred_fallthru
      _
    // Predicated region
    $region10: #{_mlp_forward_impl.1} parent=1 // pred_check
      _
    $region11: #{_mlp_forward_impl.1} parent=1 // pred_check_branch
      %23 = sbr.rel (0) target = $region13
    $region12: #{_mlp_forward_impl.1} parent=1 // pred_region
      _
    $region13: #{_mlp_forward_impl.1} parent=1 // pred_fallthru
      _
    // Predicated region
    $region14: #{_mlp_forward_impl.1} parent=1 // pred_check
      _
    $region15: #{_mlp_forward_impl.1} parent=1 // pred_check_branch
      %25 = sbr.rel (0) target = $region17
    $region16: #{_mlp_forward_impl.1} parent=1 // pred_region
      _
    $region17: #{_mlp_forward_impl.1} parent=1 // pred_fallthru
      _
    // Predicated region
    $region18: #{_mlp_forward_impl.1} parent=1 // pred_check
      _
    $region19: #{_mlp_forward_impl.1} parent=1 // pred_check_branch
      %27 = sbr.rel (0) target = $region21
    $region20: #{_mlp_forward_impl.1} parent=1 // pred_region
      _
    $region21: #{_mlp_forward_impl.1} parent=1 // pred_fallthru
      _
    // Predicated region
    $region22: #{_mlp_forward_impl.1} parent=1 // pred_check
      _
    $region23: #{_mlp_forward_impl.1} parent=1 // pred_check_branch
      %29 = sbr.rel (0) target = $region25
    $region24: #{_mlp_forward_impl.1} parent=1 // pred_region
      _
    $region25: #{_mlp_forward_impl.1} parent=1 // pred_fallthru
      _
    %p32 = scmp.lt.u32.totalorder 4, 8
    %p33 = pneg %p32
    // Predicated region
    $region26: #{_mlp_forward_impl.1} parent=1 // pred_check
      _
    $region27: #{_mlp_forward_impl.1} parent=1 // pred_check_branch
      %35 = sbr.rel (%p32) target = $region29
    $region28: #{_mlp_forward_impl.1} parent=1 // pred_region
      %s80 = sand.u32 4, 7
      %p81 = scmp.eq.s32.totalorder %s80, 0
      %p82 = pneg %p81
      // Predicated region
      $region41: #{_mlp_forward_impl.1} parent=28 // pred_check
        _
      $region42: #{_mlp_forward_impl.1} parent=28 // pred_check_branch
        %84 = sbr.rel (%p81) target = $region44
      $region43: #{_mlp_forward_impl.1} parent=28 // pred_region
        %s85 = sand.u32 4, 7
        %s86 = ssub.s32 4, %s85
        %s87 = scalar_lea.vmem %s1, %s86
        %s88 = ssub.s32 4, %s85
        %s89 = scalar_lea.vmem [#allocation2], %s88
        loop: start=0, step=1, limit=1
        $region45: #{_mlp_forward_impl.1} parent=43 // loop_pre_header
          _
        $region46: #{_mlp_forward_impl.1} parent=43 // loop_header
          %s91 = sphi 0, %s95
          %p92 = scmp.ge.s32.totalorder %s91, 1
          %s96 = sphi %s1, %s1
          %s97 = sphi [#allocation2], [#allocation2]
        $region47: #{_mlp_forward_impl.1} parent=43 // loop_header_branch
          %94 = sbr.rel (%p92) target = $region51
        $region48: #{_mlp_forward_impl.1} parent=43 // loop_body
          _
        $region49: #{_mlp_forward_impl.1} parent=43 // loop_footer
          %s95 = sadd.s32 1, %s91
        $region50: #{_mlp_forward_impl.1} parent=43 // loop_footer_branch
          %90 = sbr.rel target = $region46
        $region51: #{_mlp_forward_impl.1} parent=43 // loop_exit
          _
        %s98 = sshllo.u32 0, %s85
        loop: start=0, step=1, limit=1
        $region52: #{_mlp_forward_impl.1} parent=43 // loop_pre_header
          _
        $region53: #{_mlp_forward_impl.1} parent=43 // loop_header
          %s100 = sphi 0, %s104
          %p101 = scmp.ge.s32.totalorder %s100, 1
          %s105 = sphi %s87, %s87
          %s106 = sphi %s89, %s89
        $region54: #{_mlp_forward_impl.1} parent=43 // loop_header_branch
          %103 = sbr.rel (%p101) target = $region58
        $region55: #{_mlp_forward_impl.1} parent=43 // loop_body
          %v107 = vld [vmem:[%s105] sm:%s98]
          %108 = vst [vmem:[%s106] sm:%s98] %v107
          %v109 = vld [vmem:[%s105 + $0x10] sm:%s98]
          %110 = vst [vmem:[%s106 + $0x4] sm:%s98] %v109
          %v111 = vld [vmem:[%s105 + $0x4] sm:%s98]
          %112 = vst [vmem:[%s106 + $0x8] sm:%s98] %v111
          %v113 = vld [vmem:[%s105 + $0x14] sm:%s98]
          %114 = vst [vmem:[%s106 + $0xc] sm:%s98] %v113
          %v115 = vld [vmem:[%s105 + $0x8] sm:%s98]
          %116 = vst [vmem:[%s106 + $0x10] sm:%s98] %v115
          %v117 = vld [vmem:[%s105 + $0x18] sm:%s98]
          %118 = vst [vmem:[%s106 + $0x14] sm:%s98] %v117
          %v119 = vld [vmem:[%s105 + $0xc] sm:%s98]
          %120 = vst [vmem:[%s106 + $0x18] sm:%s98] %v119
          %v121 = vld [vmem:[%s105 + $0x1c] sm:%s98]
          %122 = vst [vmem:[%s106 + $0x1c] sm:%s98] %v121
          %v123 = vld [vmem:[%s105 + $0x20] sm:%s98]
          %124 = vst [vmem:[%s106 + $0x20] sm:%s98] %v123
          %v125 = vld [vmem:[%s105 + $0x30] sm:%s98]
          %126 = vst [vmem:[%s106 + $0x24] sm:%s98] %v125
          %v127 = vld [vmem:[%s105 + $0x24] sm:%s98]
          %128 = vst [vmem:[%s106 + $0x28] sm:%s98] %v127
          %v129 = vld [vmem:[%s105 + $0x34] sm:%s98]
          %130 = vst [vmem:[%s106 + $0x2c] sm:%s98] %v129
          %v131 = vld [vmem:[%s105 + $0x28] sm:%s98]
          %132 = vst [vmem:[%s106 + $0x30] sm:%s98] %v131
          %v133 = vld [vmem:[%s105 + $0x38] sm:%s98]
          %134 = vst [vmem:[%s106 + $0x34] sm:%s98] %v133
          %v135 = vld [vmem:[%s105 + $0x2c] sm:%s98]
          %136 = vst [vmem:[%s106 + $0x38] sm:%s98] %v135
          %v137 = vld [vmem:[%s105 + $0x3c] sm:%s98]
          %138 = vst [vmem:[%s106 + $0x3c] sm:%s98] %v137
        $region56: #{_mlp_forward_impl.1} parent=43 // loop_footer
          %s104 = sadd.s32 1, %s100
        $region57: #{_mlp_forward_impl.1} parent=43 // loop_footer_branch
          %99 = sbr.rel target = $region53
        $region58: #{_mlp_forward_impl.1} parent=43 // loop_exit
          _
      $region44: #{_mlp_forward_impl.1} parent=28 // pred_fallthru
        _
    $region29: #{_mlp_forward_impl.1} parent=1 // pred_fallthru
      _
    // Predicated region
    $region30: #{_mlp_forward_impl.1} parent=1 // pred_check
      %p36 = pneg %p32
    $region31: #{_mlp_forward_impl.1} parent=1 // pred_check_branch
      %38 = sbr.rel (%p36) target = $region33
    $region32: #{_mlp_forward_impl.1} parent=1 // pred_region
      %s39 = sshllo.u32 0, 4
      loop: start=0, step=1, limit=1
      $region34: #{_mlp_forward_impl.1} parent=32 // loop_pre_header
        _
      $region35: #{_mlp_forward_impl.1} parent=32 // loop_header
        %s41 = sphi 0, %s45
        %p42 = scmp.ge.s32.totalorder %s41, 1
        %s46 = sphi %s1, %s1
        %s47 = sphi [#allocation2], [#allocation2]
      $region36: #{_mlp_forward_impl.1} parent=32 // loop_header_branch
        %44 = sbr.rel (%p42) target = $region40
      $region37: #{_mlp_forward_impl.1} parent=32 // loop_body
        %v48 = vld [vmem:[%s46] sm:%s39]
        %49 = vst [vmem:[%s47] sm:%s39] %v48
        %v50 = vld [vmem:[%s46 + $0x10] sm:%s39]
        %51 = vst [vmem:[%s47 + $0x4] sm:%s39] %v50
        %v52 = vld [vmem:[%s46 + $0x4] sm:%s39]
        %53 = vst [vmem:[%s47 + $0x8] sm:%s39] %v52
        %v54 = vld [vmem:[%s46 + $0x14] sm:%s39]
        %55 = vst [vmem:[%s47 + $0xc] sm:%s39] %v54
        %v56 = vld [vmem:[%s46 + $0x8] sm:%s39]
        %57 = vst [vmem:[%s47 + $0x10] sm:%s39] %v56
        %v58 = vld [vmem:[%s46 + $0x18] sm:%s39]
        %59 = vst [vmem:[%s47 + $0x14] sm:%s39] %v58
        %v60 = vld [vmem:[%s46 + $0xc] sm:%s39]
        %61 = vst [vmem:[%s47 + $0x18] sm:%s39] %v60
        %v62 = vld [vmem:[%s46 + $0x1c] sm:%s39]
        %63 = vst [vmem:[%s47 + $0x1c] sm:%s39] %v62
        %v64 = vld [vmem:[%s46 + $0x20] sm:%s39]
        %65 = vst [vmem:[%s47 + $0x20] sm:%s39] %v64
        %v66 = vld [vmem:[%s46 + $0x30] sm:%s39]
        %67 = vst [vmem:[%s47 + $0x24] sm:%s39] %v66
        %v68 = vld [vmem:[%s46 + $0x24] sm:%s39]
        %69 = vst [vmem:[%s47 + $0x28] sm:%s39] %v68
        %v70 = vld [vmem:[%s46 + $0x34] sm:%s39]
        %71 = vst [vmem:[%s47 + $0x2c] sm:%s39] %v70
        %v72 = vld [vmem:[%s46 + $0x28] sm:%s39]
        %73 = vst [vmem:[%s47 + $0x30] sm:%s39] %v72
        %v74 = vld [vmem:[%s46 + $0x38] sm:%s39]
        %75 = vst [vmem:[%s47 + $0x34] sm:%s39] %v74
        %v76 = vld [vmem:[%s46 + $0x2c] sm:%s39]
        %77 = vst [vmem:[%s47 + $0x38] sm:%s39] %v76
        %v78 = vld [vmem:[%s46 + $0x3c] sm:%s39]
        %79 = vst [vmem:[%s47 + $0x3c] sm:%s39] %v78
      $region38: #{_mlp_forward_impl.1} parent=32 // loop_footer
        %s45 = sadd.s32 1, %s41
      $region39: #{_mlp_forward_impl.1} parent=32 // loop_footer_branch
        %40 = sbr.rel target = $region35
      $region40: #{_mlp_forward_impl.1} parent=32 // loop_exit
        _
    $region33: #{_mlp_forward_impl.1} parent=1 // pred_fallthru
      _
    // Predicated region
    $region59: #{_mlp_forward_impl.1} parent=1 // pred_check
      _
    $region60: #{_mlp_forward_impl.1} parent=1 // pred_check_branch
      %141 = sbr.rel (0) target = $region62
    $region61: #{_mlp_forward_impl.1} parent=1 // pred_region
      %142 = vsyncadd [#allocation7], 1024
    $region62: #{_mlp_forward_impl.1} parent=1 // pred_fallthru
      _
    %s143 = scalar_lea.sflag [#allocation7], 1
    %s145 = sshll.u32 1, 14
    %s146 = sxor.u32 4294967295, %s145
    %s148 = sld [smem:[#allocation0]]
    %s149 = sadd.s32 2, %s148
    %s151 = sshll.u32 7, 26
    %s152 = sxor.u32 4294967295, %s151
    %s153 = sand.u32 0, %s152
    %s154 = sshll.u32 %s149, 26
    %s155 = sor.u32 %s153, %s154
    %s156 = sshll.u32 [#allocation3], 4
    %s157 = int_to_ptr.vmem [resolvable:$true] %s156
    %160 = sst [smem:[#allocation11]] 256
    %s161 = scalar_lea.smem [#allocation11], 1
    %162 = sst [smem:[%s161]] 256
    %s163 = scalar_lea.smem [#allocation11], 2
    %164 = sst [smem:[%s163]] 2
    %s165 = scalar_lea.smem [#allocation11], 3
    %166 = sst [smem:[%s165]] 64
    %s167 = scalar_lea.smem [#allocation11], 4
    %168 = sst [smem:[%s167]] 128
    %s169 = scalar_lea.smem [#allocation11], 5
    %170 = sst [smem:[%s169]] 2
    %s171 = scalar_lea.smem [#allocation11], 6
    %172 = sst [smem:[%s171]] 128
    %s173 = scalar_lea.smem [#allocation11], 7
    %174 = sst [smem:[%s173]] 64
    %s175 = scalar_lea.smem [#allocation11], 8
    %176 = sst [smem:[%s175]] 4
    %178 = dma.general %s3, 8192, %s157, %s143, [#allocation10], [#allocation11], %s155, 0
    %s179 = scalar_lea.sflag [#allocation7], 2
    // Predicated region
    $region63: #{_mlp_forward_impl.1} parent=1 // pred_check
      _
    $region64: #{_mlp_forward_impl.1} parent=1 // pred_check_branch
      %181 = sbr.rel target = $region66
    $region65: #{_mlp_forward_impl.1} parent=1 // pred_region
      %182 = sst [smem:[#allocation14]] [#allocation13]
      %183 = sst [smem:[#allocation15]] [#allocation12]
    $region66: #{_mlp_forward_impl.1} parent=1 // pred_fallthru
      _
    %185 = shalt.err (0)
    %s187 = sshll.u32 [#allocation4], 4
    %s188 = int_to_ptr.vmem [resolvable:$true] %s187
    %190 = dma.hbm_to_vmem [thread:$0]  %s5, 2048, %s188, %s179
    %s191 = scalar_lea.sflag [#allocation7], 3
    %p193 = scmp.lt.u32.totalorder 64, 8
    %p194 = pneg %p193
    // Predicated region
    $region67: #{_mlp_forward_impl.1} parent=1 // pred_check
      _
    $region68: #{_mlp_forward_impl.1} parent=1 // pred_check_branch
      %196 = sbr.rel (%p193) target = $region70
    $region69: #{_mlp_forward_impl.1} parent=1 // pred_region
      %s211 = sand.u32 64, 7
      %p212 = scmp.eq.s32.totalorder %s211, 0
      // Predicated region
      $region82: #{_mlp_forward_impl.1} parent=69 // pred_check
        %p213 = pneg %p212
      $region83: #{_mlp_forward_impl.1} parent=69 // pred_check_branch
        %215 = sbr.rel (%p213) target = $region85
      $region84: #{_mlp_forward_impl.1} parent=69 // pred_region
        loop: start=0, step=1, limit=1
        $region86: #{_mlp_forward_impl.1} parent=84 // loop_pre_header
          _
        $region87: #{_mlp_forward_impl.1} parent=84 // loop_header
          %s217 = sphi 0, %s221
          %p218 = scmp.ge.s32.totalorder %s217, 1
          %s222 = sphi %s7, %s7
          %s223 = sphi [#allocation5], [#allocation5]
        $region88: #{_mlp_forward_impl.1} parent=84 // loop_header_branch
          %220 = sbr.rel (%p218) target = $region92
        $region89: #{_mlp_forward_impl.1} parent=84 // loop_body
          %v224 = vld [vmem:[%s222] sm:$0xff]
          %225 = vst [vmem:[%s223] sm:$0xff] %v224
          %v226 = vld [vmem:[%s222 + $0x8] sm:$0xff]
          %227 = vst [vmem:[%s223 + $0x8] sm:$0xff] %v226
          %v228 = vld [vmem:[%s222 + $0x10] sm:$0xff]
          %229 = vst [vmem:[%s223 + $0x10] sm:$0xff] %v228
          %v230 = vld [vmem:[%s222 + $0x18] sm:$0xff]
          %231 = vst [vmem:[%s223 + $0x18] sm:$0xff] %v230
          %v232 = vld [vmem:[%s222 + $0x20] sm:$0xff]
          %233 = vst [vmem:[%s223 + $0x20] sm:$0xff] %v232
          %v234 = vld [vmem:[%s222 + $0x28] sm:$0xff]
          %235 = vst [vmem:[%s223 + $0x28] sm:$0xff] %v234
          %v236 = vld [vmem:[%s222 + $0x30] sm:$0xff]
          %237 = vst [vmem:[%s223 + $0x30] sm:$0xff] %v236
          %v238 = vld [vmem:[%s222 + $0x38] sm:$0xff]
          %239 = vst [vmem:[%s223 + $0x38] sm:$0xff] %v238
        $region90: #{_mlp_forward_impl.1} parent=84 // loop_footer
          %s221 = sadd.s32 1, %s217
        $region91: #{_mlp_forward_impl.1} parent=84 // loop_footer_branch
          %216 = sbr.rel target = $region87
        $region92: #{_mlp_forward_impl.1} parent=84 // loop_exit
          _
      $region85: #{_mlp_forward_impl.1} parent=69 // pred_fallthru
        _
      %p240 = pneg %p212
      // Predicated region
      $region93: #{_mlp_forward_impl.1} parent=69 // pred_check
        _
      $region94: #{_mlp_forward_impl.1} parent=69 // pred_check_branch
        %242 = sbr.rel (%p212) target = $region96
      $region95: #{_mlp_forward_impl.1} parent=69 // pred_region
        %s243 = sand.u32 64, 7
      $region96: #{_mlp_forward_impl.1} parent=69 // pred_fallthru
        _
    $region70: #{_mlp_forward_impl.1} parent=1 // pred_fallthru
      _
    // Predicated region
    $region71: #{_mlp_forward_impl.1} parent=1 // pred_check
      %p197 = pneg %p193
    $region72: #{_mlp_forward_impl.1} parent=1 // pred_check_branch
      %199 = sbr.rel (%p197) target = $region74
    $region73: #{_mlp_forward_impl.1} parent=1 // pred_region
      %s200 = sshllo.u32 0, 64
      loop: start=0, step=1, limit=1
      $region75: #{_mlp_forward_impl.1} parent=73 // loop_pre_header
        _
      $region76: #{_mlp_forward_impl.1} parent=73 // loop_header
        %s202 = sphi 0, %s206
        %p203 = scmp.ge.s32.totalorder %s202, 1
        %s207 = sphi %s7, %s7
        %s208 = sphi [#allocation5], [#allocation5]
      $region77: #{_mlp_forward_impl.1} parent=73 // loop_header_branch
        %205 = sbr.rel (%p203) target = $region81
      $region78: #{_mlp_forward_impl.1} parent=73 // loop_body
        %v209 = vld [vmem:[%s207] sm:%s200]
        %210 = vst [vmem:[%s208] sm:%s200] %v209
      $region79: #{_mlp_forward_impl.1} parent=73 // loop_footer
        %s206 = sadd.s32 1, %s202
      $region80: #{_mlp_forward_impl.1} parent=73 // loop_footer_branch
        %201 = sbr.rel target = $region76
      $region81: #{_mlp_forward_impl.1} parent=73 // loop_exit
        _
    $region74: #{_mlp_forward_impl.1} parent=1 // pred_fallthru
      _
    // Predicated region
    $region97: #{_mlp_forward_impl.1} parent=1 // pred_check
      _
    $region98: #{_mlp_forward_impl.1} parent=1 // pred_check_branch
      %246 = sbr.rel (0) target = $region100
    $region99: #{_mlp_forward_impl.1} parent=1 // pred_region
      %247 = vsyncadd %s191, 1024
    $region100: #{_mlp_forward_impl.1} parent=1 // pred_fallthru
      _
    %s248 = scalar_lea.sflag [#allocation7], 4
    %p250 = scmp.lt.u32.totalorder 1, 8
    %p251 = pneg %p250
    // Predicated region
    $region101: #{_mlp_forward_impl.1} parent=1 // pred_check
      _
    $region102: #{_mlp_forward_impl.1} parent=1 // pred_check_branch
      %253 = sbr.rel (%p250) target = $region104
    $region103: #{_mlp_forward_impl.1} parent=1 // pred_region
      %s268 = sand.u32 1, 7
      %p269 = scmp.eq.s32.totalorder %s268, 0
      %p270 = pneg %p269
      // Predicated region
      $region116: #{_mlp_forward_impl.1} parent=103 // pred_check
        _
      $region117: #{_mlp_forward_impl.1} parent=103 // pred_check_branch
        %272 = sbr.rel (%p269) target = $region119
      $region118: #{_mlp_forward_impl.1} parent=103 // pred_region
        %s273 = sand.u32 1, 7
        %s274 = ssub.s32 1, %s273
        %s275 = scalar_lea.vmem %s9, %s274
        %s276 = ssub.s32 1, %s273
        %s277 = scalar_lea.vmem [#allocation6], %s276
        %s278 = sshllo.u32 0, %s273
        loop: start=0, step=1, limit=1
        $region120: #{_mlp_forward_impl.1} parent=118 // loop_pre_header
          _
        $region121: #{_mlp_forward_impl.1} parent=118 // loop_header
          %s280 = sphi 0, %s284
          %p281 = scmp.ge.s32.totalorder %s280, 1
          %s285 = sphi %s275, %s275
          %s286 = sphi %s277, %s277
        $region122: #{_mlp_forward_impl.1} parent=118 // loop_header_branch
          %283 = sbr.rel (%p281) target = $region126
        $region123: #{_mlp_forward_impl.1} parent=118 // loop_body
          %v287 = vld [vmem:[%s285] sm:%s278]
          %288 = vst [vmem:[%s286] sm:%s278] %v287
        $region124: #{_mlp_forward_impl.1} parent=118 // loop_footer
          %s284 = sadd.s32 1, %s280
        $region125: #{_mlp_forward_impl.1} parent=118 // loop_footer_branch
          %279 = sbr.rel target = $region121
        $region126: #{_mlp_forward_impl.1} parent=118 // loop_exit
          _
      $region119: #{_mlp_forward_impl.1} parent=103 // pred_fallthru
        _
    $region104: #{_mlp_forward_impl.1} parent=1 // pred_fallthru
      _
    // Predicated region
    $region105: #{_mlp_forward_impl.1} parent=1 // pred_check
      %p254 = pneg %p250
    $region106: #{_mlp_forward_impl.1} parent=1 // pred_check_branch
      %256 = sbr.rel (%p254) target = $region108
    $region107: #{_mlp_forward_impl.1} parent=1 // pred_region
      %s257 = sshllo.u32 0, 1
      loop: start=0, step=1, limit=1
      $region109: #{_mlp_forward_impl.1} parent=107 // loop_pre_header
        _
      $region110: #{_mlp_forward_impl.1} parent=107 // loop_header
        %s259 = sphi 0, %s263
        %p260 = scmp.ge.s32.totalorder %s259, 1
        %s264 = sphi %s9, %s9
        %s265 = sphi [#allocation6], [#allocation6]
      $region111: #{_mlp_forward_impl.1} parent=107 // loop_header_branch
        %262 = sbr.rel (%p260) target = $region115
      $region112: #{_mlp_forward_impl.1} parent=107 // loop_body
        %v266 = vld [vmem:[%s264] sm:%s257]
        %267 = vst [vmem:[%s265] sm:%s257] %v266
      $region113: #{_mlp_forward_impl.1} parent=107 // loop_footer
        %s263 = sadd.s32 1, %s259
      $region114: #{_mlp_forward_impl.1} parent=107 // loop_footer_branch
        %258 = sbr.rel target = $region110
      $region115: #{_mlp_forward_impl.1} parent=107 // loop_exit
        _
    $region108: #{_mlp_forward_impl.1} parent=1 // pred_fallthru
      _
    // Predicated region
    $region127: #{_mlp_forward_impl.1} parent=1 // pred_check
      _
    $region128: #{_mlp_forward_impl.1} parent=1 // pred_check_branch
      %291 = sbr.rel (0) target = $region130
    $region129: #{_mlp_forward_impl.1} parent=1 // pred_region
      %292 = vsyncadd %s248, 16
    $region130: #{_mlp_forward_impl.1} parent=1 // pred_fallthru
      _
    %v293 = vld [vmem:[%s0] sm:$0xff]
    %s294 = smul.u32 4, 4
    %s295 = smul.u32 %s294, 4
    %s296 = sshll.u32 %s295, 4
    %297 = dma.done [#allocation7], %s296
    %v298 = vld [vmem:[%s2] sm:$0xf]
    %v299 = vpack.c.bf16 %v293, %v293
    %v300 = vld [vmem:[#allocation2] sm:$0xff]
    %v301 = vld [vmem:[#allocation2 + $0x8] sm:$0xff]
    %v302 = vld [vmem:[#allocation2 + $0x10] sm:$0xff]
    %v303 = vld [vmem:[#allocation2 + $0x18] sm:$0xff]
    %v304 = vld [vmem:[#allocation2 + $0x20] sm:$0xff]
    %v305 = vld [vmem:[#allocation2 + $0x28] sm:$0xff]
    %v306 = vld [vmem:[#allocation2 + $0x30] sm:$0xff]
    %v307 = vld [vmem:[#allocation2 + $0x38] sm:$0xff]
    %v309 = vlaneseq
    %v310 = vshrl.u32 %v309, 7
    %v311 = vsub.s32 0, %v310
    %v312 = vrot.slane %v298, %v311
    %v313 = vlaneseq
    %v314 = vshrl.u32 %v313, 7
    %v315 = vsub.s32 1, %v314
    %v316 = vrot.slane %v298, %v315
    %v317 = vlaneseq
    %v318 = vshrl.u32 %v317, 7
    %v319 = vsub.s32 2, %v318
    %v320 = vrot.slane %v298, %v319
    %v321 = vlaneseq
    %v322 = vshrl.u32 %v321, 7
    %v323 = vsub.s32 3, %v322
    %v324 = vrot.slane %v298, %v323
    %vm329 = vcmask 261120
    %v331 = vsel %vm329, %v299, 0
    %333 = vmatprep.subr.bf16.mxu0 %v301
    %334 = vmatpush1.bf16.msra.mxu0 %v300
    %335 = vmatprep.subr.bf16.mxu0 %v305
    %336 = vmatpush1.bf16.msra.mxu0 %v304
    %337 = vmatprep.subr.bf16.mxu0 0
    %338 = vmatpush1.bf16.msra.mxu0 0
    %339 = vmatprep.subr.bf16.mxu0 0
    %340 = vmatpush1.bf16.msra.mxu0 0
    %341 = vmatprep.subr.bf16.mxu0 0
    %342 = vmatpush1.bf16.msra.mxu0 0
    %343 = vmatprep.subr.bf16.mxu0 0
    %344 = vmatpush1.bf16.msra.mxu0 0
    %345 = vmatprep.subr.bf16.mxu0 0
    %346 = vmatpush1.bf16.msra.mxu0 0
    %347 = vmatprep.subr.bf16.mxu0 0
    %348 = vmatpush1.bf16.msra.mxu0 0
    %349 = vmatprep.subr.bf16.mxu0 0
    %350 = vmatpush1.bf16.msra.mxu0 0
    %351 = vmatprep.subr.bf16.mxu0 0
    %352 = vmatpush1.bf16.msra.mxu0 0
    %353 = vmatprep.subr.bf16.mxu0 0
    %354 = vmatpush1.bf16.msra.mxu0 0
    %355 = vmatprep.subr.bf16.mxu0 0
    %356 = vmatpush1.bf16.msra.mxu0 0
    %357 = vmatprep.subr.bf16.mxu0 0
    %358 = vmatpush1.bf16.msra.mxu0 0
    %359 = vmatprep.subr.bf16.mxu0 0
    %360 = vmatpush1.bf16.msra.mxu0 0
    %361 = vmatprep.subr.bf16.mxu0 0
    %362 = vmatpush1.bf16.msra.mxu0 0
    %363 = vmatprep.subr.bf16.mxu0 0
    %364 = vmatpush1.bf16.msra.mxu0 0
    %365 = vmatprep.mubr.bf16.mxu0 0
    %366 = vmatmul.mubr.bf16.gmra.mrb[0].mxu0 %v331
    %v367 = vpop.f32.mrb[0].mxu0
    %v368 = vadd.f32 %v312, %v367
    %v369 = vpop.f32.mrb[0].mxu0
    %v370 = vadd.f32 %v316, %v369
    %v371 = vpop.f32.mrb[0].mxu0
    %v372 = vpop.f32.mrb[0].mxu0
    %373 = vdwg.mxu0
    %374 = vmatprep.subr.bf16.mxu0 %v303
    %375 = vmatpush1.bf16.msra.mxu0 %v302
    %376 = vmatprep.subr.bf16.mxu0 %v307
    %377 = vmatpush1.bf16.msra.mxu0 %v306
    %378 = vmatprep.subr.bf16.mxu0 0
    %379 = vmatpush1.bf16.msra.mxu0 0
    %380 = vmatprep.subr.bf16.mxu0 0
    %381 = vmatpush1.bf16.msra.mxu0 0
    %382 = vmatprep.subr.bf16.mxu0 0
    %383 = vmatpush1.bf16.msra.mxu0 0
    %384 = vmatprep.subr.bf16.mxu0 0
    %385 = vmatpush1.bf16.msra.mxu0 0
    %386 = vmatprep.subr.bf16.mxu0 0
    %387 = vmatpush1.bf16.msra.mxu0 0
    %388 = vmatprep.subr.bf16.mxu0 0
    %389 = vmatpush1.bf16.msra.mxu0 0
    %390 = vmatprep.subr.bf16.mxu0 0
    %391 = vmatpush1.bf16.msra.mxu0 0
    %392 = vmatprep.subr.bf16.mxu0 0
    %393 = vmatpush1.bf16.msra.mxu0 0
    %394 = vmatprep.subr.bf16.mxu0 0
    %395 = vmatpush1.bf16.msra.mxu0 0
    %396 = vmatprep.subr.bf16.mxu0 0
    %397 = vmatpush1.bf16.msra.mxu0 0
    %398 = vmatprep.subr.bf16.mxu0 0
    %399 = vmatpush1.bf16.msra.mxu0 0
    %400 = vmatprep.subr.bf16.mxu0 0
    %401 = vmatpush1.bf16.msra.mxu0 0
    %402 = vmatprep.subr.bf16.mxu0 0
    %403 = vmatpush1.bf16.msra.mxu0 0
    %404 = vmatprep.subr.bf16.mxu0 0
    %405 = vmatpush1.bf16.msra.mxu0 0
    %406 = vmatprep.mubr.bf16.mxu0 0
    %407 = vmatmul.mubr.bf16.gmra.mrb[0].mxu0 %v331
    %v408 = vpop.f32.mrb[0].mxu0
    %v409 = vadd.f32 %v320, %v408
    %v410 = vpop.f32.mrb[0].mxu0
    %v411 = vadd.f32 %v324, %v410
    %v412 = vpop.f32.mrb[0].mxu0
    %v413 = vpop.f32.mrb[0].mxu0
    %414 = vdwg.mxu0
    %v415 = vmax.f32 %v368, 0.0
    %v416 = vmax.f32 %v370, 0.0
    %v417 = vmax.f32 %v409, 0.0
    %v418 = vmax.f32 %v411, 0.0
    %s419 = smul.u32 4, 64
    %s420 = smul.u32 %s419, 2
    %s421 = sshll.u32 %s420, 4
    %422 = dma.done %s143, %s421
    %v423 = vld [vmem:[%s4] sm:$0x3]
    %v424 = vpack.c.bf16 %v415, %v415
    %v425 = vpack.c.bf16 %v416, %v416
    %v426 = vpack.c.bf16 %v417, %v417
    %v427 = vpack.c.bf16 %v418, %v418
    %v428 = vld [vmem:[#allocation3] sm:$0xff]
    %v429 = vld [vmem:[#allocation3 + $0x8] sm:$0xff]
    %v430 = vld [vmem:[#allocation3 + $0x10] sm:$0xff]
    %v431 = vld [vmem:[#allocation3 + $0x18] sm:$0xff]
    %v432 = vld [vmem:[#allocation3 + $0x20] sm:$0xff]
    %v433 = vld [vmem:[#allocation3 + $0x28] sm:$0xff]
    %v434 = vld [vmem:[#allocation3 + $0x30] sm:$0xff]
    %v435 = vld [vmem:[#allocation3 + $0x38] sm:$0xff]
    %v436 = vld [vmem:[#allocation3 + $0x40] sm:$0xff]
    %v437 = vld [vmem:[#allocation3 + $0x48] sm:$0xff]
    %v438 = vld [vmem:[#allocation3 + $0x50] sm:$0xff]
    %v439 = vld [vmem:[#allocation3 + $0x58] sm:$0xff]
    %v440 = vld [vmem:[#allocation3 + $0x60] sm:$0xff]
    %v441 = vld [vmem:[#allocation3 + $0x68] sm:$0xff]
    %v442 = vld [vmem:[#allocation3 + $0x70] sm:$0xff]
    %v443 = vld [vmem:[#allocation3 + $0x78] sm:$0xff]
    %v444 = vld [vmem:[#allocation3 + $0x80] sm:$0xff]
    %v445 = vld [vmem:[#allocation3 + $0x88] sm:$0xff]
    %v446 = vld [vmem:[#allocation3 + $0x90] sm:$0xff]
    %v447 = vld [vmem:[#allocation3 + $0x98] sm:$0xff]
    %v448 = vld [vmem:[#allocation3 + $0xa0] sm:$0xff]
    %v449 = vld [vmem:[#allocation3 + $0xa8] sm:$0xff]
    %v450 = vld [vmem:[#allocation3 + $0xb0] sm:$0xff]
    %v451 = vld [vmem:[#allocation3 + $0xb8] sm:$0xff]
    %v452 = vld [vmem:[#allocation3 + $0xc0] sm:$0xff]
    %v453 = vld [vmem:[#allocation3 + $0xc8] sm:$0xff]
    %v454 = vld [vmem:[#allocation3 + $0xd0] sm:$0xff]
    %v455 = vld [vmem:[#allocation3 + $0xd8] sm:$0xff]
    %v456 = vld [vmem:[#allocation3 + $0xe0] sm:$0xff]
    %v457 = vld [vmem:[#allocation3 + $0xe8] sm:$0xff]
    %v458 = vld [vmem:[#allocation3 + $0xf0] sm:$0xff]
    %v459 = vld [vmem:[#allocation3 + $0xf8] sm:$0xff]
    %v460 = vld [vmem:[#allocation3 + $0x100] sm:$0xff]
    %v461 = vld [vmem:[#allocation3 + $0x108] sm:$0xff]
    %v462 = vld [vmem:[#allocation3 + $0x110] sm:$0xff]
    %v463 = vld [vmem:[#allocation3 + $0x118] sm:$0xff]
    %v464 = vld [vmem:[#allocation3 + $0x120] sm:$0xff]
    %v465 = vld [vmem:[#allocation3 + $0x128] sm:$0xff]
    %v466 = vld [vmem:[#allocation3 + $0x130] sm:$0xff]
    %v467 = vld [vmem:[#allocation3 + $0x138] sm:$0xff]
    %v468 = vld [vmem:[#allocation3 + $0x140] sm:$0xff]
    %v469 = vld [vmem:[#allocation3 + $0x148] sm:$0xff]
    %v470 = vld [vmem:[#allocation3 + $0x150] sm:$0xff]
    %v471 = vld [vmem:[#allocation3 + $0x158] sm:$0xff]
    %v472 = vld [vmem:[#allocation3 + $0x160] sm:$0xff]
    %v473 = vld [vmem:[#allocation3 + $0x168] sm:$0xff]
    %v474 = vld [vmem:[#allocation3 + $0x170] sm:$0xff]
    %v475 = vld [vmem:[#allocation3 + $0x178] sm:$0xff]
    %v476 = vld [vmem:[#allocation3 + $0x180] sm:$0xff]
    %v477 = vld [vmem:[#allocation3 + $0x188] sm:$0xff]
    %v478 = vld [vmem:[#allocation3 + $0x190] sm:$0xff]
    %v479 = vld [vmem:[#allocation3 + $0x198] sm:$0xff]
    %v480 = vld [vmem:[#allocation3 + $0x1a0] sm:$0xff]
    %v481 = vld [vmem:[#allocation3 + $0x1a8] sm:$0xff]
    %v482 = vld [vmem:[#allocation3 + $0x1b0] sm:$0xff]
    %v483 = vld [vmem:[#allocation3 + $0x1b8] sm:$0xff]
    %v484 = vld [vmem:[#allocation3 + $0x1c0] sm:$0xff]
    %v485 = vld [vmem:[#allocation3 + $0x1c8] sm:$0xff]
    %v486 = vld [vmem:[#allocation3 + $0x1d0] sm:$0xff]
    %v487 = vld [vmem:[#allocation3 + $0x1d8] sm:$0xff]
    %v488 = vld [vmem:[#allocation3 + $0x1e0] sm:$0xff]
    %v489 = vld [vmem:[#allocation3 + $0x1e8] sm:$0xff]
    %v490 = vld [vmem:[#allocation3 + $0x1f0] sm:$0xff]
    %v491 = vld [vmem:[#allocation3 + $0x1f8] sm:$0xff]
    %v493 = vlaneseq
    %v494 = vshrl.u32 %v493, 7
    %v495 = vsub.s32 0, %v494
    %v496 = vrot.slane %v423, %v495
    %v497 = vlaneseq
    %v498 = vshrl.u32 %v497, 7
    %v499 = vsub.s32 1, %v498
    %v500 = vrot.slane %v423, %v499
    %503 = vmatprep.subr.bf16.mxu0 %v429
    %504 = vmatpush1.bf16.msra.mxu0 %v428
    %505 = vmatprep.subr.bf16.mxu0 %v431
    %506 = vmatpush1.bf16.msra.mxu0 %v430
    %507 = vmatprep.subr.bf16.mxu0 %v433
    %508 = vmatpush1.bf16.msra.mxu0 %v432
    %509 = vmatprep.subr.bf16.mxu0 %v435
    %510 = vmatpush1.bf16.msra.mxu0 %v434
    %511 = vmatprep.subr.bf16.mxu0 %v437
    %512 = vmatpush1.bf16.msra.mxu0 %v436
    %513 = vmatprep.subr.bf16.mxu0 %v439
    %514 = vmatpush1.bf16.msra.mxu0 %v438
    %515 = vmatprep.subr.bf16.mxu0 %v441
    %516 = vmatpush1.bf16.msra.mxu0 %v440
    %517 = vmatprep.subr.bf16.mxu0 %v443
    %518 = vmatpush1.bf16.msra.mxu0 %v442
    %519 = vmatprep.subr.bf16.mxu0 %v445
    %520 = vmatpush1.bf16.msra.mxu0 %v444
    %521 = vmatprep.subr.bf16.mxu0 %v447
    %522 = vmatpush1.bf16.msra.mxu0 %v446
    %523 = vmatprep.subr.bf16.mxu0 %v449
    %524 = vmatpush1.bf16.msra.mxu0 %v448
    %525 = vmatprep.subr.bf16.mxu0 %v451
    %526 = vmatpush1.bf16.msra.mxu0 %v450
    %527 = vmatprep.subr.bf16.mxu0 %v453
    %528 = vmatpush1.bf16.msra.mxu0 %v452
    %529 = vmatprep.subr.bf16.mxu0 %v455
    %530 = vmatpush1.bf16.msra.mxu0 %v454
    %531 = vmatprep.subr.bf16.mxu0 %v457
    %532 = vmatpush1.bf16.msra.mxu0 %v456
    %533 = vmatprep.subr.bf16.mxu0 %v459
    %534 = vmatpush1.bf16.msra.mxu0 %v458
    %535 = vmatprep.mubr.bf16.mxu0 %v425
    %536 = vmatmul.mubr.bf16.gmra.mrb[0].mxu0 %v424
    %v537 = vpop.f32.mrb[0].mxu0
    %v538 = vadd.f32 %v496, %v537
    %v539 = vpop.f32.mrb[0].mxu0
    %v540 = vadd.f32 %v500, %v539
    %v541 = vpop.f32.mrb[0].mxu0
    %v542 = vpop.f32.mrb[0].mxu0
    %543 = vdwg.mxu0
    %544 = vmatprep.subr.bf16.mxu0 %v461
    %545 = vmatpush1.bf16.msra.mxu0 %v460
    %546 = vmatprep.subr.bf16.mxu0 %v463
    %547 = vmatpush1.bf16.msra.mxu0 %v462
    %548 = vmatprep.subr.bf16.mxu0 %v465
    %549 = vmatpush1.bf16.msra.mxu0 %v464
    %550 = vmatprep.subr.bf16.mxu0 %v467
    %551 = vmatpush1.bf16.msra.mxu0 %v466
    %552 = vmatprep.subr.bf16.mxu0 %v469
    %553 = vmatpush1.bf16.msra.mxu0 %v468
    %554 = vmatprep.subr.bf16.mxu0 %v471
    %555 = vmatpush1.bf16.msra.mxu0 %v470
    %556 = vmatprep.subr.bf16.mxu0 %v473
    %557 = vmatpush1.bf16.msra.mxu0 %v472
    %558 = vmatprep.subr.bf16.mxu0 %v475
    %559 = vmatpush1.bf16.msra.mxu0 %v474
    %560 = vmatprep.subr.bf16.mxu0 %v477
    %561 = vmatpush1.bf16.msra.mxu0 %v476
    %562 = vmatprep.subr.bf16.mxu0 %v479
    %563 = vmatpush1.bf16.msra.mxu0 %v478
    %564 = vmatprep.subr.bf16.mxu0 %v481
    %565 = vmatpush1.bf16.msra.mxu0 %v480
    %566 = vmatprep.subr.bf16.mxu0 %v483
    %567 = vmatpush1.bf16.msra.mxu0 %v482
    %568 = vmatprep.subr.bf16.mxu0 %v485
    %569 = vmatpush1.bf16.msra.mxu0 %v484
    %570 = vmatprep.subr.bf16.mxu0 %v487
    %571 = vmatpush1.bf16.msra.mxu0 %v486
    %572 = vmatprep.subr.bf16.mxu0 %v489
    %573 = vmatpush1.bf16.msra.mxu0 %v488
    %574 = vmatprep.subr.bf16.mxu0 %v491
    %575 = vmatpush1.bf16.msra.mxu0 %v490
    %576 = vmatprep.mubr.bf16.mxu0 %v427
    %577 = vmatmul.mubr.bf16.gmra.mrb[0].mxu0 %v426
    %v578 = vpop.f32.mrb[0].mxu0
    %v579 = vadd.f32 %v538, %v578
    %v580 = vpop.f32.mrb[0].mxu0
    %v581 = vadd.f32 %v540, %v580
    %v582 = vpop.f32.mrb[0].mxu0
    %v583 = vpop.f32.mrb[0].mxu0
    %584 = vdwg.mxu0
    %v585 = vmax.f32 %v579, 0.0
    %v586 = vmax.f32 %v581, 0.0
    %s587 = smul.u32 4, 32
    %s588 = smul.u32 %s587, 1
    %s589 = sshll.u32 %s588, 4
    %590 = dma.done %s179, %s589
    %v591 = vld [vmem:[%s6] sm:$0x1]
    %v592 = vpack.c.bf16 %v585, %v585
    %v593 = vpack.c.bf16 %v586, %v586
    %v594 = vld [vmem:[#allocation4] sm:$0xff]
    %v595 = vld [vmem:[#allocation4 + $0x8] sm:$0xff]
    %v596 = vld [vmem:[#allocation4 + $0x10] sm:$0xff]
    %v597 = vld [vmem:[#allocation4 + $0x18] sm:$0xff]
    %v598 = vld [vmem:[#allocation4 + $0x20] sm:$0xff]
    %v599 = vld [vmem:[#allocation4 + $0x28] sm:$0xff]
    %v600 = vld [vmem:[#allocation4 + $0x30] sm:$0xff]
    %v601 = vld [vmem:[#allocation4 + $0x38] sm:$0xff]
    %v602 = vld [vmem:[#allocation4 + $0x40] sm:$0xff]
    %v603 = vld [vmem:[#allocation4 + $0x48] sm:$0xff]
    %v604 = vld [vmem:[#allocation4 + $0x50] sm:$0xff]
    %v605 = vld [vmem:[#allocation4 + $0x58] sm:$0xff]
    %v606 = vld [vmem:[#allocation4 + $0x60] sm:$0xff]
    %v607 = vld [vmem:[#allocation4 + $0x68] sm:$0xff]
    %v608 = vld [vmem:[#allocation4 + $0x70] sm:$0xff]
    %v609 = vld [vmem:[#allocation4 + $0x78] sm:$0xff]
    %v611 = vlaneseq
    %v612 = vshrl.u32 %v611, 7
    %v613 = vsub.s32 0, %v612
    %v614 = vrot.slane %v591, %v613
    %616 = vmatprep.subr.bf16.mxu0 0
    %617 = vmatpush1.bf16.msra.mxu0 %v594
    %618 = vmatprep.subr.bf16.mxu0 0
    %619 = vmatpush1.bf16.msra.mxu0 %v595
    %620 = vmatprep.subr.bf16.mxu0 0
    %621 = vmatpush1.bf16.msra.mxu0 %v596
    %622 = vmatprep.subr.bf16.mxu0 0
    %623 = vmatpush1.bf16.msra.mxu0 %v597
    %624 = vmatprep.subr.bf16.mxu0 0
    %625 = vmatpush1.bf16.msra.mxu0 %v598
    %626 = vmatprep.subr.bf16.mxu0 0
    %627 = vmatpush1.bf16.msra.mxu0 %v599
    %628 = vmatprep.subr.bf16.mxu0 0
    %629 = vmatpush1.bf16.msra.mxu0 %v600
    %630 = vmatprep.subr.bf16.mxu0 0
    %631 = vmatpush1.bf16.msra.mxu0 %v601
    %632 = vmatprep.subr.bf16.mxu0 0
    %633 = vmatpush1.bf16.msra.mxu0 %v602
    %634 = vmatprep.subr.bf16.mxu0 0
    %635 = vmatpush1.bf16.msra.mxu0 %v603
    %636 = vmatprep.subr.bf16.mxu0 0
    %637 = vmatpush1.bf16.msra.mxu0 %v604
    %638 = vmatprep.subr.bf16.mxu0 0
    %639 = vmatpush1.bf16.msra.mxu0 %v605
    %640 = vmatprep.subr.bf16.mxu0 0
    %641 = vmatpush1.bf16.msra.mxu0 %v606
    %642 = vmatprep.subr.bf16.mxu0 0
    %643 = vmatpush1.bf16.msra.mxu0 %v607
    %644 = vmatprep.subr.bf16.mxu0 0
    %645 = vmatpush1.bf16.msra.mxu0 %v608
    %646 = vmatprep.subr.bf16.mxu0 0
    %647 = vmatpush1.bf16.msra.mxu0 %v609
    %648 = vmatprep.mubr.bf16.mxu0 %v593
    %649 = vmatmul.mubr.bf16.gmra.mrb[0].mxu0 %v592
    %v650 = vpop.f32.mrb[0].mxu0
    %v651 = vadd.f32 %v614, %v650
    %v652 = vpop.f32.mrb[0].mxu0
    %v653 = vpop.f32.mrb[0].mxu0
    %v654 = vpop.f32.mrb[0].mxu0
    %655 = vdwg.mxu0
    %v656 = vmax.f32 %v651, 0.0
    %s657 = smul.u32 4, 16
    %s658 = smul.u32 %s657, 1
    %s659 = sshll.u32 %s658, 4
    %660 = dma.done %s191, %s659
    %v661 = vld [vmem:[%s8] sm:$0x1]
    %v662 = vpack.c.bf16 %v656, %v656
    %v663 = vld [vmem:[#allocation5] sm:$0xff]
    %v664 = vld [vmem:[#allocation5 + $0x8] sm:$0xff]
    %v665 = vld [vmem:[#allocation5 + $0x10] sm:$0xff]
    %v666 = vld [vmem:[#allocation5 + $0x18] sm:$0xff]
    %v667 = vld [vmem:[#allocation5 + $0x20] sm:$0xff]
    %v668 = vld [vmem:[#allocation5 + $0x28] sm:$0xff]
    %v669 = vld [vmem:[#allocation5 + $0x30] sm:$0xff]
    %v670 = vld [vmem:[#allocation5 + $0x38] sm:$0xff]
    %v672 = vlaneseq
    %v673 = vshrl.u32 %v672, 7
    %v674 = vsub.s32 0, %v673
    %v675 = vrot.slane %v661, %v674
    %677 = vmatprep.subr.bf16.mxu0 0
    %678 = vmatpush1.bf16.msra.mxu0 %v663
    %679 = vmatprep.subr.bf16.mxu0 0
    %680 = vmatpush1.bf16.msra.mxu0 %v664
    %681 = vmatprep.subr.bf16.mxu0 0
    %682 = vmatpush1.bf16.msra.mxu0 %v665
    %683 = vmatprep.subr.bf16.mxu0 0
    %684 = vmatpush1.bf16.msra.mxu0 %v666
    %685 = vmatprep.subr.bf16.mxu0 0
    %686 = vmatpush1.bf16.msra.mxu0 %v667
    %687 = vmatprep.subr.bf16.mxu0 0
    %688 = vmatpush1.bf16.msra.mxu0 %v668
    %689 = vmatprep.subr.bf16.mxu0 0
    %690 = vmatpush1.bf16.msra.mxu0 %v669
    %691 = vmatprep.subr.bf16.mxu0 0
    %692 = vmatpush1.bf16.msra.mxu0 %v670
    %693 = vmatprep.subr.bf16.mxu0 0
    %694 = vmatpush1.bf16.msra.mxu0 0
    %695 = vmatprep.subr.bf16.mxu0 0
    %696 = vmatpush1.bf16.msra.mxu0 0
    %697 = vmatprep.subr.bf16.mxu0 0
    %698 = vmatpush1.bf16.msra.mxu0 0
    %699 = vmatprep.subr.bf16.mxu0 0
    %700 = vmatpush1.bf16.msra.mxu0 0
    %701 = vmatprep.subr.bf16.mxu0 0
    %702 = vmatpush1.bf16.msra.mxu0 0
    %703 = vmatprep.subr.bf16.mxu0 0
    %704 = vmatpush1.bf16.msra.mxu0 0
    %705 = vmatprep.subr.bf16.mxu0 0
    %706 = vmatpush1.bf16.msra.mxu0 0
    %707 = vmatprep.subr.bf16.mxu0 0
    %708 = vmatpush1.bf16.msra.mxu0 0
    %709 = vmatprep.mubr.bf16.mxu0 0
    %710 = vmatmul.mubr.bf16.gmra.mrb[0].mxu0 %v662
    %v711 = vpop.f32.mrb[0].mxu0
    %v712 = vadd.f32 %v675, %v711
    %v713 = vpop.f32.mrb[0].mxu0
    %v714 = vpop.f32.mrb[0].mxu0
    %v715 = vpop.f32.mrb[0].mxu0
    %716 = vdwg.mxu0
    %v717 = vmax.f32 %v712, 0.0
    %s718 = smul.u32 1, 1
    %s719 = sshll.u32 %s718, 4
    %720 = dma.done %s248, %s719
    %v721 = vld [vmem:[#allocation8] sm:$0x1]
    %v722 = vld [vmem:[#allocation6] sm:$0x1]
    %v724 = vlaneseq
    %v725 = vshrl.u32 %v724, 7
    %v726 = vsub.s32 0, %v725
    %v727 = vrot.slane %v722, %v726
    %v729 = vmul.f32 %v717, %v727
    %vm730 = vcmask 523264
    %v731 = vsel %vm730, %v729, 0.0
    %732 = vadd.xlane.f32.xlu0 %v731
    %v733 = vpop.xlane.xlu0 %732
    %v735 = vlaneseq
    %v736 = vshrl.u32 %v735, 7
    %v737 = vsub.s32 0, %v736
    %v738 = vrot.slane %v721, %v737
    %v740 = vadd.f32 %v733, %v738
    %vm741 = vcmask 7168
    %742 = vst.msk [vmem:[%s11] sm:$0xff] %vm741, %v740
    // Predicated region
    $region131: #{_mlp_forward_impl.1} parent=1 // pred_check
      _
    $region132: #{_mlp_forward_impl.1} parent=1 // pred_check_branch
      %744 = sbr.rel (0) target = $region134
    $region133: #{_mlp_forward_impl.1} parent=1 // pred_region
      _
    $region134: #{_mlp_forward_impl.1} parent=1 // pred_fallthru
      _
    // Predicated region
    $region135: #{_mlp_forward_impl.1} parent=1 // pred_check
      _
    $region136: #{_mlp_forward_impl.1} parent=1 // pred_check_branch
      %746 = sbr.rel (0) target = $region138
    $region137: #{_mlp_forward_impl.1} parent=1 // pred_region
      _
    $region138: #{_mlp_forward_impl.1} parent=1 // pred_fallthru
      _
  %747 = vsyncmov [#allocation7]
  %s748 = vpop.sfrf %747
  %p749 = scmp.eq.s32.totalorder %s748, 0
  %p750 = pneg %p749
  %752 = shalt.err (%p750)
  %s753 = scalar_lea.sflag [#allocation7], 1
  %754 = vsyncmov %s753
  %s755 = vpop.sfrf %754
  %p756 = scmp.eq.s32.totalorder %s755, 0
  %p757 = pneg %p756
  %759 = shalt.err (%p757)
  %s760 = scalar_lea.sflag [#allocation7], 2
  %761 = vsyncmov %s760
  %s762 = vpop.sfrf %761
  %p763 = scmp.eq.s32.totalorder %s762, 0
  %p764 = pneg %p763
  %766 = shalt.err (%p764)
  %s767 = scalar_lea.sflag [#allocation7], 3
  %768 = vsyncmov %s767
  %s769 = vpop.sfrf %768
  %p770 = scmp.eq.s32.totalorder %s769, 0
  %p771 = pneg %p770
  %773 = shalt.err (%p771)
  %s774 = scalar_lea.sflag [#allocation7], 4
  %775 = vsyncmov %s774
  %s776 = vpop.sfrf %775
  %p777 = scmp.eq.s32.totalorder %s776, 0
  %p778 = pneg %p777
  %780 = shalt.err (%p778)

</llo_original>
